<compile_context>
chip_gen: v6e
topology: v6e:2x2x1
jax: 0.10.0
libtpu: 0.0.40
codegen_flags: <defaults>
</compile_context>

<pallas_src>
import functools

import jax
import jax.numpy as jnp
from jax.experimental import pallas as pl
from jax.experimental.pallas import tpu as pltpu

EMBED_DIM = 16
NUM_HEADS = 4          # present in the torch module but unused by forward()
NUM_DIMS = 2


def _two_dir_attn_kernel(x_ref, tf_ref, mask_ref, rev_ref,
                         w_proj_ref, b_proj_ref, w_out_ref, b_out_ref,
                         o_ref, *, seq_len, batch_block):
    E = EMBED_DIM
    D = NUM_DIMS
    S = seq_len
    Bb = batch_block
    BS = Bb * S              # rows per direction in this grid step
    M = 2 * BS               # stacked rows: [fwd blocks | bwd blocks]
    DE = D * E               # 32
    DIRW = 3 * DE            # 96 projection columns per direction

    # ---- one fused matmul for ALL projections (q/k/v, fwd/bwd, both dims) ---
    # x block is (BS, E); w_proj is (E, 192) bf16.  The 1/sqrt(E) attention
    # scale is already folded into the q columns (weights AND biases).
    x_bf = x_ref[...].astype(jnp.bfloat16)
    y = (jnp.dot(x_bf, w_proj_ref[...], preferred_element_type=jnp.float32)
         + b_proj_ref[...])                                        # (BS, 192) f32

    tf_big = tf_ref[...]      # (M, M) block-diag tfidf (bwd blocks pre-flipped)
    off_mask = mask_ref[...]  # (M, M) additive mask: 0 on blocks, -1e30 off
    rev = rev_ref[...]        # (BS, BS) block-diag per-batch sequence reversal
    w_out = w_out_ref[...]    # (DE, E) bf16
    b_out = b_out_ref[...]    # (1, E)  f32

    acc = jnp.zeros((M, E), jnp.float32)
    for d in range(D):        # D = 2, unrolled: a few full-width MXU pushes each
        def col(base, which):  # which: 0 = q, 1 = k, 2 = v
            lo = base + which * DE + d * E
            return y[:, lo:lo + E]
        # Stack fwd (cols [0:96)) over bwd (cols [96:192)) along sublanes.
        q = jnp.concatenate([col(0, 0), col(DIRW, 0)], axis=0).astype(jnp.bfloat16)
        k = jnp.concatenate([col(0, 1), col(DIRW, 1)], axis=0).astype(jnp.bfloat16)
        v = jnp.concatenate([col(0, 2), col(DIRW, 2)], axis=0).astype(jnp.bfloat16)

        # One batched scores matmul for all (b, dir) blocks of this dim.
        scores = jax.lax.dot_general(q, k, (((1,), (1,)), ((), ())),
                                     preferred_element_type=jnp.float32)  # (M, M)
        scores = scores * tf_big + off_mask

        # Row softmax over all M columns == per-block softmax (off-block
        # entries contribute exp(-1e30) = 0 to the denominator).
        m = jnp.max(scores, axis=1, keepdims=True)
        e = jnp.exp(scores - m)
        denom = jnp.sum(e, axis=1, keepdims=True)                   # (M, 1)
        ctx = (jnp.dot(e.astype(jnp.bfloat16), v,
                       preferred_element_type=jnp.float32)
               * pl.reciprocal(denom, approx=True))                 # (M, E)

        # Out-projection decomposed over d (8-aligned sublane weight slice).
        acc = acc + jnp.dot(ctx.astype(jnp.bfloat16),
                            w_out[d * E:(d + 1) * E, :],
                            preferred_element_type=jnp.float32)     # (M, E)

    acc_fwd = acc[:BS, :]
    acc_bwd = acc[BS:, :]
    # Flip the backward context back to the module's mixing index with one
    # tiny block-diagonal permutation matmul (exact, kept in f32).
    acc_bwd = jnp.dot(rev, acc_bwd, preferred_element_type=jnp.float32)

    o_ref[...] = (0.5 * (acc_fwd + acc_bwd) + b_out).astype(o_ref.dtype)


def init_params(key):
    E, D = EMBED_DIM, NUM_DIMS
    DE = E * D
    names = ["q_fwd", "k_fwd", "v_fwd", "q_bwd", "k_bwd", "v_bwd"]
    keys = jax.random.split(key, 2 * len(names) + 2)
    params = {}
    i = 0
    for n in names:
        params[f"w_{n}"] = 0.1 * jax.random.normal(keys[i], (E, DE), jnp.float32)
        i += 1
        params[f"b_{n}"] = 0.1 * jax.random.normal(keys[i], (1, DE), jnp.float32)
        i += 1
    params["w_out"] = 0.1 * jax.random.normal(keys[i], (DE, E), jnp.float32)
    i += 1
    params["b_out"] = 0.1 * jax.random.normal(keys[i], (1, E), jnp.float32)
    return params


def pack_params(params):
    """Pack the 14 per-layer tensors into 4 kernel operands (one-time).

    w_proj / b_proj columns: [q_fwd | k_fwd | v_fwd | q_bwd | k_bwd | v_bwd],
    each D*E wide.  The 1/sqrt(E) attention scale is folded into the q blocks
    (weights AND biases).  Weights are stored in bf16 (f32 accumulation in the
    kernel via preferred_element_type); biases stay f32.
    """
    s = 1.0 / (EMBED_DIM ** 0.5)
    w_proj = jnp.concatenate(
        [params["w_q_fwd"] * s, params["w_k_fwd"], params["w_v_fwd"],
         params["w_q_bwd"] * s, params["w_k_bwd"], params["w_v_bwd"]], axis=1)
    b_proj = jnp.concatenate(
        [params["b_q_fwd"] * s, params["b_k_fwd"], params["b_v_fwd"],
         params["b_q_bwd"] * s, params["b_k_bwd"], params["b_v_bwd"]], axis=1)
    return {"w_proj": w_proj.astype(jnp.bfloat16),
            "b_proj": b_proj.astype(jnp.float32),
            "w_out": params["w_out"].astype(jnp.bfloat16),
            "b_out": params["b_out"].astype(jnp.float32)}


@functools.partial(jax.jit, static_argnames=("batch_block",))
def two_directional_attention(x, tfidf_scores, packed, *, batch_block=None):
    B, S, E = x.shape
    assert E == EMBED_DIM
    # Default: >= 2 grid steps when B is even so the "parallel" axis can split
    # across v7x's two TensorCores; single-TC chips see negligible overhead.
    if batch_block is None:
        Bb = B // 2 if (B >= 2 and B % 2 == 0) else B
    else:
        Bb = batch_block
    assert B % Bb == 0
    n_blocks = B // Bb
    BS = Bb * S
    M = 2 * BS

    x2d = x.reshape(B * S, E)            # free bitcast; rows ordered (b, s)

    # --- wrapper-side precompute (plain XLA, not repeated per grid step) ----
    f32 = jnp.float32
    # Per grid step: block-diag [tfidf[b] ... | flip2(tfidf[b]) ...] of size (M, M).
    tf_fwd = tfidf_scores.astype(f32).reshape(n_blocks, Bb, S, S)
    tf_bwd = jnp.flip(tfidf_scores.astype(f32), axis=(1, 2)).reshape(n_blocks, Bb, S, S)
    blocks = jnp.concatenate([tf_fwd, tf_bwd], axis=1)           # (n, 2Bb, S, S)
    eye2b = jnp.eye(2 * Bb, dtype=f32)
    tf_big = jnp.einsum("ngst,gh->ngsht", blocks, eye2b).reshape(n_blocks * M, M)

    grp = jnp.arange(M, dtype=jnp.int32) // S
    off_mask = jnp.where(grp[:, None] == grp[None, :], 0.0, -1e30).astype(f32)  # (M, M)

    rev_s = jnp.flip(jnp.eye(S, dtype=f32), axis=1)              # (S, S) anti-diag
    rev_big = jnp.kron(jnp.eye(Bb, dtype=f32), rev_s)            # (BS, BS)

    kernel = functools.partial(_two_dir_attn_kernel, seq_len=S, batch_block=Bb)

    def fixed(arr):
        return pl.BlockSpec(arr.shape, lambda i, _nd=arr.ndim: (0,) * _nd)

    out_flat = pl.pallas_call(
        kernel,
        out_shape=jax.ShapeDtypeStruct((B * S, E), x.dtype),
        grid_spec=pltpu.PrefetchScalarGridSpec(
            num_scalar_prefetch=0,
            grid=(n_blocks,),
            in_specs=[
                pl.BlockSpec((BS, E), lambda i: (i, 0)),     # x rows
                pl.BlockSpec((M, M), lambda i: (i, 0)),      # block-diag tfidf
                fixed(off_mask),                             # additive off-block mask
                fixed(rev_big),                              # block-diag reversal
                fixed(packed["w_proj"]),
                fixed(packed["b_proj"]),
                fixed(packed["w_out"]),
                fixed(packed["b_out"]),
            ],
            out_specs=pl.BlockSpec((BS, E), lambda i: (i, 0)),
        ),
        compiler_params=pltpu.CompilerParams(
            dimension_semantics=("parallel",)),
    )(x2d, tf_big, off_mask, rev_big, packed["w_proj"], packed["b_proj"],
      packed["w_out"], packed["b_out"])

    return out_flat.reshape(B, S, E)     # free bitcast back to (B, S, E)


def reference_jax(x, tfidf_scores, params):
    """Pure-JAX mirror of the PyTorch forward for validation."""
    B, S, E = x.shape
    D = NUM_DIMS

    def lin(xin, w, b):
        return xin @ w + b[0]

    def qkv(xin, tag):
        q = lin(xin, params[f"w_q_{tag}"], params[f"b_q_{tag}"]).reshape(B, S, D, E)
        k = lin(xin, params[f"w_k_{tag}"], params[f"b_k_{tag}"]).reshape(B, S, D, E)
        v = lin(xin, params[f"w_v_{tag}"], params[f"b_v_{tag}"]).reshape(B, S, D, E)
        return q, k, v

    x_rev = jnp.flip(x, axis=1)
    qf, kf, vf = qkv(x, "fwd")
    qb, kb, vb = qkv(x_rev, "bwd")
    sf = jnp.einsum("bqde,bkde->bqkd", qf, kf) / (E ** 0.5)
    sb = jnp.einsum("bqde,bkde->bqkd", qb, kb) / (E ** 0.5)
    t = tfidf_scores[..., None]
    sf = sf * t
    sb = sb * t
    pf = jax.nn.softmax(sf, axis=-2)
    pb = jax.nn.softmax(sb, axis=-2)
    cf = jnp.einsum("bqkd,bkde->bqde", pf, vf)
    cb = jnp.einsum("bqkd,bkde->bqde", pb, vb)
    ctx = (0.5 * cf + 0.5 * cb).reshape(B, S, D * E)
    return ctx @ params["w_out"] + params["b_out"][0]


if __name__ == "__main__":
    key = jax.random.PRNGKey(0)
    k_p, k_x, k_t = jax.random.split(key, 3)

    B, S, E = 2, 8, EMBED_DIM
    params = init_params(k_p)
    packed = pack_params(params)            # one-time weight packing (bf16)
    x = jax.random.normal(k_x, (B, S, E), jnp.float32)
    tfidf_scores = jax.random.uniform(k_t, (B, S, S), jnp.float32)

    out = two_directional_attention(x, tfidf_scores, packed)
    out = jax.block_until_ready(out)

    ref = reference_jax(x, tfidf_scores, params)
    assert out.shape == (B, S, E)
    # bf16 matmul operands + approx reciprocal -> loosened tolerance vs f32 ref.
    err = float(jnp.max(jnp.abs(out - ref)))
    assert jnp.allclose(out, ref, atol=2e-2, rtol=2e-2), \
        f"mismatch vs reference (max abs err {err})"

    print("KERNEL_OK")
</pallas_src>

<mosaic_0001>
module attributes {stable_mosaic.version = 11 : i64} {
  func.func @_two_dir_attn_kernel(%arg0: i32, %arg1: memref<8x16xf32, #tpu.memory_space<vmem>>, %arg2: memref<16x16xf32, #tpu.memory_space<vmem>>, %arg3: memref<16x16xf32, #tpu.memory_space<vmem>>, %arg4: memref<8x8xf32, #tpu.memory_space<vmem>>, %arg5: memref<16x192xbf16, #tpu.memory_space<vmem>>, %arg6: memref<1x192xf32, #tpu.memory_space<vmem>>, %arg7: memref<32x16xbf16, #tpu.memory_space<vmem>>, %arg8: memref<1x16xf32, #tpu.memory_space<vmem>>, %arg9: memref<8x16xf32, #tpu.memory_space<vmem>>) attributes {dimension_semantics = [#tpu.dimension_semantics<parallel>], iteration_bounds = array<i64: 2>, scalar_prefetch = 0 : i64, scratch_operands = 0 : i64, tpu.core_type = #tpu.core_type<tc>, window_params = [{transform_indices = @transform_0, window_bounds = array<i64: 8, 16>}, {transform_indices = @transform_1, window_bounds = array<i64: 16, 16>}, {pipeline_mode = #tpu.pipeline_mode<synchronous>, transform_indices = @transform_2, window_bounds = array<i64: 16, 16>}, {pipeline_mode = #tpu.pipeline_mode<synchronous>, transform_indices = @transform_3, window_bounds = array<i64: 8, 8>}, {pipeline_mode = #tpu.pipeline_mode<synchronous>, transform_indices = @transform_4, window_bounds = array<i64: 16, 192>}, {pipeline_mode = #tpu.pipeline_mode<synchronous>, transform_indices = @transform_5, window_bounds = array<i64: 1, 192>}, {pipeline_mode = #tpu.pipeline_mode<synchronous>, transform_indices = @transform_6, window_bounds = array<i64: 32, 16>}, {pipeline_mode = #tpu.pipeline_mode<synchronous>, transform_indices = @transform_7, window_bounds = array<i64: 1, 16>}, {transform_indices = @transform_8, window_bounds = array<i64: 8, 16>}]} {
    %c0 = arith.constant 0 : index
    %c0_0 = arith.constant 0 : index
    %0 = vector.load %arg1[%c0, %c0_0] : memref<8x16xf32, #tpu.memory_space<vmem>>, vector<8x16xf32>
    %1 = arith.truncf %0 : vector<8x16xf32> to vector<8x16xbf16>
    %c0_1 = arith.constant 0 : index
    %c0_2 = arith.constant 0 : index
    %2 = vector.load %arg5[%c0_1, %c0_2] : memref<16x192xbf16, #tpu.memory_space<vmem>>, vector<16x192xbf16>
    %cst = arith.constant dense<0.000000e+00> : vector<8x192xf32>
    %3 = tpu.matmul %1, %2, %cst {dimension_numbers = #tpu.dot_dimension_numbers<[1], [0], [0], [1], [0, 0, 1, 1], [], []>} : vector<8x16xbf16>, vector<16x192xbf16>, vector<8x192xf32> -> vector<8x192xf32>
    %c0_3 = arith.constant 0 : index
    %c0_4 = arith.constant 0 : index
    %4 = vector.load %arg6[%c0_3, %c0_4] : memref<1x192xf32, #tpu.memory_space<vmem>>, vector<1x192xf32>
    %5 = vector.broadcast %4 : vector<1x192xf32> to vector<8x192xf32>
    %6 = arith.addf %3, %5 : vector<8x192xf32>
    %c0_5 = arith.constant 0 : index
    %c0_6 = arith.constant 0 : index
    %7 = vector.load %arg2[%c0_5, %c0_6] : memref<16x16xf32, #tpu.memory_space<vmem>>, vector<16x16xf32>
    %c0_7 = arith.constant 0 : index
    %c0_8 = arith.constant 0 : index
    %8 = vector.load %arg3[%c0_7, %c0_8] : memref<16x16xf32, #tpu.memory_space<vmem>>, vector<16x16xf32>
    %c0_9 = arith.constant 0 : index
    %c0_10 = arith.constant 0 : index
    %9 = vector.load %arg4[%c0_9, %c0_10] : memref<8x8xf32, #tpu.memory_space<vmem>>, vector<8x8xf32>
    %c0_11 = arith.constant 0 : index
    %c0_12 = arith.constant 0 : index
    %10 = vector.load %arg7[%c0_11, %c0_12] : memref<32x16xbf16, #tpu.memory_space<vmem>>, vector<32x16xbf16>
    %c0_13 = arith.constant 0 : index
    %c0_14 = arith.constant 0 : index
    %11 = vector.load %arg8[%c0_13, %c0_14] : memref<1x16xf32, #tpu.memory_space<vmem>>, vector<1x16xf32>
    %cst_15 = arith.constant 0.000000e+00 : f32
    %12 = vector.broadcast %cst_15 : f32 to vector<16x16xf32>
    %13 = vector.extract_strided_slice %6 {offsets = [0, 0], sizes = [8, 16], strides = [1, 1]} : vector<8x192xf32> to vector<8x16xf32>
    %14 = vector.extract_strided_slice %6 {offsets = [0, 96], sizes = [8, 16], strides = [1, 1]} : vector<8x192xf32> to vector<8x16xf32>
    %15 = tpu.concatenate %13, %14 in 0 : vector<8x16xf32>, vector<8x16xf32> -> vector<16x16xf32>
    %16 = arith.truncf %15 : vector<16x16xf32> to vector<16x16xbf16>
    %17 = vector.extract_strided_slice %6 {offsets = [0, 32], sizes = [8, 16], strides = [1, 1]} : vector<8x192xf32> to vector<8x16xf32>
    %18 = vector.extract_strided_slice %6 {offsets = [0, 128], sizes = [8, 16], strides = [1, 1]} : vector<8x192xf32> to vector<8x16xf32>
    %19 = tpu.concatenate %17, %18 in 0 : vector<8x16xf32>, vector<8x16xf32> -> vector<16x16xf32>
    %20 = arith.truncf %19 : vector<16x16xf32> to vector<16x16xbf16>
    %21 = vector.extract_strided_slice %6 {offsets = [0, 64], sizes = [8, 16], strides = [1, 1]} : vector<8x192xf32> to vector<8x16xf32>
    %22 = vector.extract_strided_slice %6 {offsets = [0, 160], sizes = [8, 16], strides = [1, 1]} : vector<8x192xf32> to vector<8x16xf32>
    %23 = tpu.concatenate %21, %22 in 0 : vector<8x16xf32>, vector<8x16xf32> -> vector<16x16xf32>
    %24 = arith.truncf %23 : vector<16x16xf32> to vector<16x16xbf16>
    %cst_16 = arith.constant dense<0.000000e+00> : vector<16x16xf32>
    %25 = tpu.matmul %16, %20, %cst_16 {dimension_numbers = #tpu.dot_dimension_numbers<[1], [1], [0], [0], [0, 0, 1, 0], [], []>} : vector<16x16xbf16>, vector<16x16xbf16>, vector<16x16xf32> -> vector<16x16xf32>
    %26 = arith.mulf %25, %7 : vector<16x16xf32>
    %27 = arith.addf %26, %8 : vector<16x16xf32>
    %cst_17 = arith.constant dense<0xFF800000> : vector<16xf32>
    %28 = vector.multi_reduction <maximumf>, %27, %cst_17 [1] : vector<16x16xf32> to vector<16xf32>
    %29 = vector.shape_cast %28 : vector<16xf32> to vector<16x1xf32>
    %30 = vector.broadcast %29 : vector<16x1xf32> to vector<16x16xf32>
    %31 = arith.subf %27, %30 : vector<16x16xf32>
    %32 = math.exp %31 : vector<16x16xf32>
    %cst_18 = arith.constant dense<0.000000e+00> : vector<16xf32>
    %33 = vector.multi_reduction <add>, %32, %cst_18 [1] : vector<16x16xf32> to vector<16xf32>
    %34 = vector.shape_cast %33 : vector<16xf32> to vector<16x1xf32>
    %35 = arith.truncf %32 : vector<16x16xf32> to vector<16x16xbf16>
    %cst_19 = arith.constant dense<0.000000e+00> : vector<16x16xf32>
    %36 = tpu.matmul %35, %24, %cst_19 {dimension_numbers = #tpu.dot_dimension_numbers<[1], [0], [0], [1], [0, 0, 1, 1], [], []>} : vector<16x16xbf16>, vector<16x16xbf16>, vector<16x16xf32> -> vector<16x16xf32>
    %37 = tpu.reciprocal %34 {approx = true} : vector<16x1xf32> -> vector<16x1xf32>
    %38 = vector.broadcast %37 : vector<16x1xf32> to vector<16x16xf32>
    %39 = arith.mulf %36, %38 : vector<16x16xf32>
    %40 = arith.truncf %39 : vector<16x16xf32> to vector<16x16xbf16>
    %41 = vector.extract_strided_slice %10 {offsets = [0, 0], sizes = [16, 16], strides = [1, 1]} : vector<32x16xbf16> to vector<16x16xbf16>
    %cst_20 = arith.constant dense<0.000000e+00> : vector<16x16xf32>
    %42 = tpu.matmul %40, %41, %cst_20 {dimension_numbers = #tpu.dot_dimension_numbers<[1], [0], [0], [1], [0, 0, 1, 1], [], []>} : vector<16x16xbf16>, vector<16x16xbf16>, vector<16x16xf32> -> vector<16x16xf32>
    %43 = arith.addf %12, %42 : vector<16x16xf32>
    %44 = vector.extract_strided_slice %6 {offsets = [0, 16], sizes = [8, 16], strides = [1, 1]} : vector<8x192xf32> to vector<8x16xf32>
    %45 = vector.extract_strided_slice %6 {offsets = [0, 112], sizes = [8, 16], strides = [1, 1]} : vector<8x192xf32> to vector<8x16xf32>
    %46 = tpu.concatenate %44, %45 in 0 : vector<8x16xf32>, vector<8x16xf32> -> vector<16x16xf32>
    %47 = arith.truncf %46 : vector<16x16xf32> to vector<16x16xbf16>
    %48 = vector.extract_strided_slice %6 {offsets = [0, 48], sizes = [8, 16], strides = [1, 1]} : vector<8x192xf32> to vector<8x16xf32>
    %49 = vector.extract_strided_slice %6 {offsets = [0, 144], sizes = [8, 16], strides = [1, 1]} : vector<8x192xf32> to vector<8x16xf32>
    %50 = tpu.concatenate %48, %49 in 0 : vector<8x16xf32>, vector<8x16xf32> -> vector<16x16xf32>
    %51 = arith.truncf %50 : vector<16x16xf32> to vector<16x16xbf16>
    %52 = vector.extract_strided_slice %6 {offsets = [0, 80], sizes = [8, 16], strides = [1, 1]} : vector<8x192xf32> to vector<8x16xf32>
    %53 = vector.extract_strided_slice %6 {offsets = [0, 176], sizes = [8, 16], strides = [1, 1]} : vector<8x192xf32> to vector<8x16xf32>
    %54 = tpu.concatenate %52, %53 in 0 : vector<8x16xf32>, vector<8x16xf32> -> vector<16x16xf32>
    %55 = arith.truncf %54 : vector<16x16xf32> to vector<16x16xbf16>
    %cst_21 = arith.constant dense<0.000000e+00> : vector<16x16xf32>
    %56 = tpu.matmul %47, %51, %cst_21 {dimension_numbers = #tpu.dot_dimension_numbers<[1], [1], [0], [0], [0, 0, 1, 0], [], []>} : vector<16x16xbf16>, vector<16x16xbf16>, vector<16x16xf32> -> vector<16x16xf32>
    %57 = arith.mulf %56, %7 : vector<16x16xf32>
    %58 = arith.addf %57, %8 : vector<16x16xf32>
    %cst_22 = arith.constant dense<0xFF800000> : vector<16xf32>
    %59 = vector.multi_reduction <maximumf>, %58, %cst_22 [1] : vector<16x16xf32> to vector<16xf32>
    %60 = vector.shape_cast %59 : vector<16xf32> to vector<16x1xf32>
    %61 = vector.broadcast %60 : vector<16x1xf32> to vector<16x16xf32>
    %62 = arith.subf %58, %61 : vector<16x16xf32>
    %63 = math.exp %62 : vector<16x16xf32>
    %cst_23 = arith.constant dense<0.000000e+00> : vector<16xf32>
    %64 = vector.multi_reduction <add>, %63, %cst_23 [1] : vector<16x16xf32> to vector<16xf32>
    %65 = vector.shape_cast %64 : vector<16xf32> to vector<16x1xf32>
    %66 = arith.truncf %63 : vector<16x16xf32> to vector<16x16xbf16>
    %cst_24 = arith.constant dense<0.000000e+00> : vector<16x16xf32>
    %67 = tpu.matmul %66, %55, %cst_24 {dimension_numbers = #tpu.dot_dimension_numbers<[1], [0], [0], [1], [0, 0, 1, 1], [], []>} : vector<16x16xbf16>, vector<16x16xbf16>, vector<16x16xf32> -> vector<16x16xf32>
    %68 = tpu.reciprocal %65 {approx = true} : vector<16x1xf32> -> vector<16x1xf32>
    %69 = vector.broadcast %68 : vector<16x1xf32> to vector<16x16xf32>
    %70 = arith.mulf %67, %69 : vector<16x16xf32>
    %71 = arith.truncf %70 : vector<16x16xf32> to vector<16x16xbf16>
    %72 = vector.extract_strided_slice %10 {offsets = [16, 0], sizes = [16, 16], strides = [1, 1]} : vector<32x16xbf16> to vector<16x16xbf16>
    %cst_25 = arith.constant dense<0.000000e+00> : vector<16x16xf32>
    %73 = tpu.matmul %71, %72, %cst_25 {dimension_numbers = #tpu.dot_dimension_numbers<[1], [0], [0], [1], [0, 0, 1, 1], [], []>} : vector<16x16xbf16>, vector<16x16xbf16>, vector<16x16xf32> -> vector<16x16xf32>
    %74 = arith.addf %43, %73 : vector<16x16xf32>
    %75 = vector.extract_strided_slice %74 {offsets = [0, 0], sizes = [8, 16], strides = [1, 1]} : vector<16x16xf32> to vector<8x16xf32>
    %76 = vector.extract_strided_slice %74 {offsets = [8, 0], sizes = [8, 16], strides = [1, 1]} : vector<16x16xf32> to vector<8x16xf32>
    %cst_26 = arith.constant dense<0.000000e+00> : vector<8x16xf32>
    %77 = tpu.matmul %9, %76, %cst_26 {dimension_numbers = #tpu.dot_dimension_numbers<[1], [0], [0], [1], [0, 0, 1, 1], [], []>} : vector<8x8xf32>, vector<8x16xf32>, vector<8x16xf32> -> vector<8x16xf32>
    %78 = arith.addf %75, %77 : vector<8x16xf32>
    %cst_27 = arith.constant 5.000000e-01 : f32
    %79 = vector.broadcast %cst_27 : f32 to vector<8x16xf32>
    %80 = arith.mulf %79, %78 : vector<8x16xf32>
    %81 = vector.broadcast %11 : vector<1x16xf32> to vector<8x16xf32>
    %82 = arith.addf %80, %81 : vector<8x16xf32>
    %c0_28 = arith.constant 0 : index
    %c0_29 = arith.constant 0 : index
    %83 = vector.load %arg9[%c0_28, %c0_29] : memref<8x16xf32, #tpu.memory_space<vmem>>, vector<8x16xf32>
    tpu.vector_store %arg9[%c0_28, %c0_29], %82 {strides = array<i32>} : memref<8x16xf32, #tpu.memory_space<vmem>>, vector<8x16xf32>,
    return
  }
  func.func @transform_0(%arg0: i32) -> (i32, i32) {
    %c0_i32 = arith.constant 0 : i32
    %c0_i32_0 = arith.constant 0 : i32
    return %arg0, %c0_i32 : i32, i32
  }
  func.func @transform_1(%arg0: i32) -> (i32, i32) {
    %c0_i32 = arith.constant 0 : i32
    %c0_i32_0 = arith.constant 0 : i32
    return %arg0, %c0_i32 : i32, i32
  }
  func.func @transform_2(%arg0: i32) -> (i32, i32) {
    %c0_i32 = arith.constant 0 : i32
    %c0_i32_0 = arith.constant 0 : i32
    %c0_i32_1 = arith.constant 0 : i32
    return %c0_i32, %c0_i32_0 : i32, i32
  }
  func.func @transform_3(%arg0: i32) -> (i32, i32) {
    %c0_i32 = arith.constant 0 : i32
    %c0_i32_0 = arith.constant 0 : i32
    %c0_i32_1 = arith.constant 0 : i32
    return %c0_i32, %c0_i32_0 : i32, i32
  }
  func.func @transform_4(%arg0: i32) -> (i32, i32) {
    %c0_i32 = arith.constant 0 : i32
    %c0_i32_0 = arith.constant 0 : i32
    %c0_i32_1 = arith.constant 0 : i32
    return %c0_i32, %c0_i32_0 : i32, i32
  }
  func.func @transform_5(%arg0: i32) -> (i32, i32) {
    %c0_i32 = arith.constant 0 : i32
    %c0_i32_0 = arith.constant 0 : i32
    %c0_i32_1 = arith.constant 0 : i32
    return %c0_i32, %c0_i32_0 : i32, i32
  }
  func.func @transform_6(%arg0: i32) -> (i32, i32) {
    %c0_i32 = arith.constant 0 : i32
    %c0_i32_0 = arith.constant 0 : i32
    %c0_i32_1 = arith.constant 0 : i32
    return %c0_i32, %c0_i32_0 : i32, i32
  }
  func.func @transform_7(%arg0: i32) -> (i32, i32) {
    %c0_i32 = arith.constant 0 : i32
    %c0_i32_0 = arith.constant 0 : i32
    %c0_i32_1 = arith.constant 0 : i32
    return %c0_i32, %c0_i32_0 : i32, i32
  }
  func.func @transform_8(%arg0: i32) -> (i32, i32) {
    %c0_i32 = arith.constant 0 : i32
    %c0_i32_0 = arith.constant 0 : i32
    return %arg0, %c0_i32 : i32, i32
  }
}

</mosaic_0001>

<llo_original>
// kernel: two_directional_attention.1
$region0: #{two_directional_attention.1}
  #allocation0 [shape = 'u32[]', space=smem, size = 0x4, offset = 0x4, fixed_abs, tag = 'smem constant byte address 0x4 - core index']
  #allocation1 [shape = 'u32[144,128]{1,0:T(1,128)}', space=vmem, size = 0x12000, scoped, tag = 'internal scratch']
  %s0 = inlined_call_operand.vmem [shape: f32[16,16], index: 0, kind: input, shape index: {}]
  %s1 = inlined_call_operand.vmem [shape: f32[32,16], index: 1, kind: input, shape index: {}]
  %s2 = inlined_call_operand.vmem [shape: f32[16,16], index: 2, kind: input, shape index: {}]
  %s3 = inlined_call_operand.vmem [shape: f32[8,8], index: 3, kind: input, shape index: {}]
  %s4 = inlined_call_operand.vmem [shape: bf16[16,192], index: 4, kind: input, shape index: {}]
  %s5 = inlined_call_operand.vmem [shape: f32[1,192], index: 5, kind: input, shape index: {}]
  %s6 = inlined_call_operand.vmem [shape: bf16[32,16], index: 6, kind: input, shape index: {}]
  %s7 = inlined_call_operand.vmem [shape: f32[1,16], index: 7, kind: input, shape index: {}]
  %s8 = inlined_call_operand.hbm [shape: f32[16,16], index: 8, kind: output, shape index: {}]
  %s9 = sld [smem:[#allocation0]]
  $region65: #{two_directional_attention.1} parent=0
    _
  %s11 = ssub.s32 1, %s9
  %s12 = scalar_select 0, %s11, %s9
  $region1: #{two_directional_attention.1} parent=0
    #allocation2 [shape = 'u8[8192]{0}', space=vmem, size = 0x2000, scoped, tag = 'output window, operand 0']
    #allocation3 [shape = 's32[2]{0}', space=sflag, size = 0x8, scoped, tag = 'scoped memory for two_directional_attention.1']
    %13 = vsyncpa [#allocation3], 0
    %s14 = scalar_lea.sflag [#allocation3], 1
    %15 = vsyncpa %s14, 0
    loop: start=0, step=1, limit=4
    $region2: #{two_directional_attention.1} parent=1 // loop_pre_header
      _
    $region3: #{two_directional_attention.1} parent=1 // loop_header
      %s17 = sphi 0, %s21
      %p18 = scmp.ge.s32.totalorder %s17, 4
      %s27 = sphi 0, %s29
      %s30 = sphi 0, %s27
      %s31 = sphi 0, %s30
      %s47 = sphi 0, %s31
      %s53 = sphi 0, %s55
      %s56 = sphi 0, %s53
      %s57 = sphi 0, %s56
      %s73 = sphi 0, %s57
      %s77 = sphi 0, %s77
      %s79 = sphi 0, %s77
      %s80 = sphi 0, %s79
      %s94 = sphi 0, %s80
      %s98 = sphi 0, %s98
      %s100 = sphi 0, %s98
      %s101 = sphi 0, %s100
      %s115 = sphi 0, %s101
      %s119 = sphi 0, %s119
      %s121 = sphi 0, %s119
      %s122 = sphi 0, %s121
      %s136 = sphi 0, %s122
      %s140 = sphi 0, %s140
      %s142 = sphi 0, %s140
      %s143 = sphi 0, %s142
      %s157 = sphi 0, %s143
      %s161 = sphi 0, %s161
      %s163 = sphi 0, %s161
      %s164 = sphi 0, %s163
      %s178 = sphi 0, %s164
      %s182 = sphi 0, %s182
      %s184 = sphi 0, %s182
      %s185 = sphi 0, %s184
      %s199 = sphi 0, %s185
      %s205 = sphi 0, %s207
      %s208 = sphi 0, %s205
      %s209 = sphi 0, %s208
      %s225 = sphi 0, %s209
    $region4: #{two_directional_attention.1} parent=1 // loop_header_branch
      %20 = sbr.rel (%p18) target = $region8
    $region5: #{two_directional_attention.1} parent=1 // loop_body
      %s22 = ssub.s32 %s17, 1
      %s23 = ssub.s32 %s17, 2
      %s24 = sadd.s32 %s17, 1
      %s25 = ssub.s32 %s17, %s24
      %p26 = scmp.eq.s32.totalorder %s25, 0
      %s28 = sadd.s32 %s27, 1
      %s29 = scalar_select %p26, %s27, %s28
      %p32 = pneg %p26
      %p33 = scmp.eq.s32.totalorder %s17, 1
      %p34 = por %p32, %p33
      %p35 = scmp.ne.s32.totalorder %s27, %s30
      %p36 = scmp.eq.s32.totalorder %s17, 0
      %p37 = por %p35, %p36
      %p38 = scmp.ne.s32.totalorder %s27, %s30
      %p39 = scmp.eq.s32.totalorder %s22, 1
      %p40 = por %p38, %p39
      %p41 = scmp.ne.s32.totalorder %s30, %s31
      %p42 = scmp.eq.s32.totalorder %s22, 0
      %p43 = por %p41, %p42
      %p44 = scmp.ne.s32.totalorder %s30, %s31
      %p45 = scmp.eq.s32.totalorder %s23, 1
      %p46 = por %p44, %p45
      %p48 = scmp.ne.s32.totalorder %s31, %s47
      %p49 = scmp.eq.s32.totalorder %s23, 0
      %p50 = por %p48, %p49
      %s51 = ssub.s32 %s17, %s24
      %p52 = scmp.eq.s32.totalorder %s51, 0
      %s54 = sadd.s32 %s53, 1
      %s55 = scalar_select %p52, %s53, %s54
      %p58 = pneg %p52
      %p59 = scmp.eq.s32.totalorder %s17, 1
      %p60 = por %p58, %p59
      %p61 = scmp.ne.s32.totalorder %s53, %s56
      %p62 = scmp.eq.s32.totalorder %s17, 0
      %p63 = por %p61, %p62
      %p64 = scmp.ne.s32.totalorder %s53, %s56
      %p65 = scmp.eq.s32.totalorder %s22, 1
      %p66 = por %p64, %p65
      %p67 = scmp.ne.s32.totalorder %s56, %s57
      %p68 = scmp.eq.s32.totalorder %s22, 0
      %p69 = por %p67, %p68
      %p70 = scmp.ne.s32.totalorder %s56, %s57
      %p71 = scmp.eq.s32.totalorder %s23, 1
      %p72 = por %p70, %p71
      %p74 = scmp.ne.s32.totalorder %s57, %s73
      %p75 = scmp.eq.s32.totalorder %s23, 0
      %p76 = por %p74, %p75
      %s78 = sadd.s32 %s77, 1
      %p81 = scmp.eq.s32.totalorder %s17, 1
      %p82 = scmp.ne.s32.totalorder %s77, %s79
      %p83 = scmp.eq.s32.totalorder %s17, 0
      %p84 = por %p82, %p83
      %p85 = scmp.ne.s32.totalorder %s77, %s79
      %p86 = scmp.eq.s32.totalorder %s22, 1
      %p87 = por %p85, %p86
      %p88 = scmp.ne.s32.totalorder %s79, %s80
      %p89 = scmp.eq.s32.totalorder %s22, 0
      %p90 = por %p88, %p89
      %p91 = scmp.ne.s32.totalorder %s79, %s80
      %p92 = scmp.eq.s32.totalorder %s23, 1
      %p93 = por %p91, %p92
      %p95 = scmp.ne.s32.totalorder %s80, %s94
      %p96 = scmp.eq.s32.totalorder %s23, 0
      %p97 = por %p95, %p96
      %s99 = sadd.s32 %s98, 1
      %p102 = scmp.eq.s32.totalorder %s17, 1
      %p103 = scmp.ne.s32.totalorder %s98, %s100
      %p104 = scmp.eq.s32.totalorder %s17, 0
      %p105 = por %p103, %p104
      %p106 = scmp.ne.s32.totalorder %s98, %s100
      %p107 = scmp.eq.s32.totalorder %s22, 1
      %p108 = por %p106, %p107
      %p109 = scmp.ne.s32.totalorder %s100, %s101
      %p110 = scmp.eq.s32.totalorder %s22, 0
      %p111 = por %p109, %p110
      %p112 = scmp.ne.s32.totalorder %s100, %s101
      %p113 = scmp.eq.s32.totalorder %s23, 1
      %p114 = por %p112, %p113
      %p116 = scmp.ne.s32.totalorder %s101, %s115
      %p117 = scmp.eq.s32.totalorder %s23, 0
      %p118 = por %p116, %p117
      %s120 = sadd.s32 %s119, 1
      %p123 = scmp.eq.s32.totalorder %s17, 1
      %p124 = scmp.ne.s32.totalorder %s119, %s121
      %p125 = scmp.eq.s32.totalorder %s17, 0
      %p126 = por %p124, %p125
      %p127 = scmp.ne.s32.totalorder %s119, %s121
      %p128 = scmp.eq.s32.totalorder %s22, 1
      %p129 = por %p127, %p128
      %p130 = scmp.ne.s32.totalorder %s121, %s122
      %p131 = scmp.eq.s32.totalorder %s22, 0
      %p132 = por %p130, %p131
      %p133 = scmp.ne.s32.totalorder %s121, %s122
      %p134 = scmp.eq.s32.totalorder %s23, 1
      %p135 = por %p133, %p134
      %p137 = scmp.ne.s32.totalorder %s122, %s136
      %p138 = scmp.eq.s32.totalorder %s23, 0
      %p139 = por %p137, %p138
      %s141 = sadd.s32 %s140, 1
      %p144 = scmp.eq.s32.totalorder %s17, 1
      %p145 = scmp.ne.s32.totalorder %s140, %s142
      %p146 = scmp.eq.s32.totalorder %s17, 0
      %p147 = por %p145, %p146
      %p148 = scmp.ne.s32.totalorder %s140, %s142
      %p149 = scmp.eq.s32.totalorder %s22, 1
      %p150 = por %p148, %p149
      %p151 = scmp.ne.s32.totalorder %s142, %s143
      %p152 = scmp.eq.s32.totalorder %s22, 0
      %p153 = por %p151, %p152
      %p154 = scmp.ne.s32.totalorder %s142, %s143
      %p155 = scmp.eq.s32.totalorder %s23, 1
      %p156 = por %p154, %p155
      %p158 = scmp.ne.s32.totalorder %s143, %s157
      %p159 = scmp.eq.s32.totalorder %s23, 0
      %p160 = por %p158, %p159
      %s162 = sadd.s32 %s161, 1
      %p165 = scmp.eq.s32.totalorder %s17, 1
      %p166 = scmp.ne.s32.totalorder %s161, %s163
      %p167 = scmp.eq.s32.totalorder %s17, 0
      %p168 = por %p166, %p167
      %p169 = scmp.ne.s32.totalorder %s161, %s163
      %p170 = scmp.eq.s32.totalorder %s22, 1
      %p171 = por %p169, %p170
      %p172 = scmp.ne.s32.totalorder %s163, %s164
      %p173 = scmp.eq.s32.totalorder %s22, 0
      %p174 = por %p172, %p173
      %p175 = scmp.ne.s32.totalorder %s163, %s164
      %p176 = scmp.eq.s32.totalorder %s23, 1
      %p177 = por %p175, %p176
      %p179 = scmp.ne.s32.totalorder %s164, %s178
      %p180 = scmp.eq.s32.totalorder %s23, 0
      %p181 = por %p179, %p180
      %s183 = sadd.s32 %s182, 1
      %p186 = scmp.eq.s32.totalorder %s17, 1
      %p187 = scmp.ne.s32.totalorder %s182, %s184
      %p188 = scmp.eq.s32.totalorder %s17, 0
      %p189 = por %p187, %p188
      %p190 = scmp.ne.s32.totalorder %s182, %s184
      %p191 = scmp.eq.s32.totalorder %s22, 1
      %p192 = por %p190, %p191
      %p193 = scmp.ne.s32.totalorder %s184, %s185
      %p194 = scmp.eq.s32.totalorder %s22, 0
      %p195 = por %p193, %p194
      %p196 = scmp.ne.s32.totalorder %s184, %s185
      %p197 = scmp.eq.s32.totalorder %s23, 1
      %p198 = por %p196, %p197
      %p200 = scmp.ne.s32.totalorder %s185, %s199
      %p201 = scmp.eq.s32.totalorder %s23, 0
      %p202 = por %p200, %p201
      %s203 = ssub.s32 %s17, %s24
      %p204 = scmp.eq.s32.totalorder %s203, 0
      %s206 = sadd.s32 %s205, 1
      %s207 = scalar_select %p204, %s205, %s206
      %p210 = pneg %p204
      %p211 = scmp.eq.s32.totalorder %s17, 1
      %p212 = por %p210, %p211
      %p213 = scmp.ne.s32.totalorder %s205, %s208
      %p214 = scmp.eq.s32.totalorder %s17, 0
      %p215 = por %p213, %p214
      %p216 = scmp.ne.s32.totalorder %s205, %s208
      %p217 = scmp.eq.s32.totalorder %s22, 1
      %p218 = por %p216, %p217
      %p219 = scmp.ne.s32.totalorder %s208, %s209
      %p220 = scmp.eq.s32.totalorder %s22, 0
      %p221 = por %p219, %p220
      %p222 = scmp.ne.s32.totalorder %s208, %s209
      %p223 = scmp.eq.s32.totalorder %s23, 1
      %p224 = por %p222, %p223
      %p226 = scmp.ne.s32.totalorder %s209, %s225
      %p227 = scmp.eq.s32.totalorder %s23, 0
      %p228 = por %p226, %p227
      %p229 = scmp.le.s32.totalorder 1, %s17
      %p230 = scmp.lt.s32.totalorder %s17, 3
      %p231 = pnand %p229, %p230
      %p232 = pneg %p231
      // Predicated region
      $region9: #{two_directional_attention.1} parent=5 // pred_check
        _
      $region10: #{two_directional_attention.1} parent=5 // pred_check_branch
        %234 = sbr.rel (%p231) target = $region12
      $region11: #{two_directional_attention.1} parent=5 // pred_region
        %s235 = ssub.s32 %s17, 1
        // Predicated region
        $region13: #{two_directional_attention.1} parent=11 // pred_check
          %p236 = pneg %p90
        $region14: #{two_directional_attention.1} parent=11 // pred_check_branch
          %238 = sbr.rel (%p236) target = $region16
        $region15: #{two_directional_attention.1} parent=11 // pred_region
          _
        $region16: #{two_directional_attention.1} parent=11 // pred_fallthru
          _
        // Predicated region
        $region17: #{two_directional_attention.1} parent=11 // pred_check
          %p239 = pneg %p111
        $region18: #{two_directional_attention.1} parent=11 // pred_check_branch
          %241 = sbr.rel (%p239) target = $region20
        $region19: #{two_directional_attention.1} parent=11 // pred_region
          _
        $region20: #{two_directional_attention.1} parent=11 // pred_fallthru
          _
        // Predicated region
        $region21: #{two_directional_attention.1} parent=11 // pred_check
          %p242 = pneg %p132
        $region22: #{two_directional_attention.1} parent=11 // pred_check_branch
          %244 = sbr.rel (%p242) target = $region24
        $region23: #{two_directional_attention.1} parent=11 // pred_region
          _
        $region24: #{two_directional_attention.1} parent=11 // pred_fallthru
          _
        // Predicated region
        $region25: #{two_directional_attention.1} parent=11 // pred_check
          %p245 = pneg %p153
        $region26: #{two_directional_attention.1} parent=11 // pred_check_branch
          %247 = sbr.rel (%p245) target = $region28
        $region27: #{two_directional_attention.1} parent=11 // pred_region
          _
        $region28: #{two_directional_attention.1} parent=11 // pred_fallthru
          _
        // Predicated region
        $region29: #{two_directional_attention.1} parent=11 // pred_check
          %p248 = pneg %p174
        $region30: #{two_directional_attention.1} parent=11 // pred_check_branch
          %250 = sbr.rel (%p248) target = $region32
        $region31: #{two_directional_attention.1} parent=11 // pred_region
          _
        $region32: #{two_directional_attention.1} parent=11 // pred_fallthru
          _
        // Predicated region
        $region33: #{two_directional_attention.1} parent=11 // pred_check
          %p251 = pneg %p195
        $region34: #{two_directional_attention.1} parent=11 // pred_check_branch
          %253 = sbr.rel (%p251) target = $region36
        $region35: #{two_directional_attention.1} parent=11 // pred_region
          _
        $region36: #{two_directional_attention.1} parent=11 // pred_fallthru
          _
      $region12: #{two_directional_attention.1} parent=5 // pred_fallthru
        _
      %p254 = scmp.lt.s32.totalorder %s17, 2
      // Predicated region
      $region37: #{two_directional_attention.1} parent=5 // pred_check
        %p255 = pneg %p254
      $region38: #{two_directional_attention.1} parent=5 // pred_check_branch
        %257 = sbr.rel (%p255) target = $region40
      $region39: #{two_directional_attention.1} parent=5 // pred_region
        // Predicated region
        $region41: #{two_directional_attention.1} parent=39 // pred_check
          %p258 = pneg %p37
        $region42: #{two_directional_attention.1} parent=39 // pred_check_branch
          %260 = sbr.rel (%p258) target = $region44
        $region43: #{two_directional_attention.1} parent=39 // pred_region
          %p261 = scmp.lt.s32.totalorder %s17, 1
          %s262 = scalar_select %p261, %s17, 1
          %s263 = smul.addr %s262, 8
          %s264 = scalar_lea.vmem %s0, %s263
        $region44: #{two_directional_attention.1} parent=39 // pred_fallthru
          _
        // Predicated region
        $region45: #{two_directional_attention.1} parent=39 // pred_check
          %p265 = pneg %p63
        $region46: #{two_directional_attention.1} parent=39 // pred_check_branch
          %267 = sbr.rel (%p265) target = $region48
        $region47: #{two_directional_attention.1} parent=39 // pred_region
          %s268 = smul.u32 2, %s17
          %p269 = scmp.lt.s32.totalorder %s268, 3
          %s270 = scalar_select %p269, %s268, 3
          %s271 = smul.addr %s270, 8
          %s272 = scalar_lea.vmem %s1, %s271
          %s273 = smul.u32 2, %s17
        $region48: #{two_directional_attention.1} parent=39 // pred_fallthru
          _
      $region40: #{two_directional_attention.1} parent=5 // pred_fallthru
        _
      %p274 = scmp.le.s32.totalorder 1, %s17
      %p275 = scmp.lt.s32.totalorder %s17, 3
      %p276 = pnand %p274, %p275
      %p277 = pneg %p276
      // Predicated region
      $region49: #{two_directional_attention.1} parent=5 // pred_check
        _
      $region50: #{two_directional_attention.1} parent=5 // pred_check_branch
        %279 = sbr.rel (%p276) target = $region52
      $region51: #{two_directional_attention.1} parent=5 // pred_region
        %s280 = ssub.s32 %s17, 1
        %p281 = scmp.lt.s32.totalorder %s22, 1
        %s282 = scalar_select %p281, %s22, 1
        %s283 = smul.addr %s282, 8
        %s284 = scalar_lea.vmem %s0, %s283
        %p285 = pneg %p43
        %p286 = pneg %p40
        %s287 = smul.u32 2, %s22
        %p288 = scmp.lt.s32.totalorder %s287, 3
        %s289 = scalar_select %p288, %s287, 3
        %s290 = smul.addr %s289, 8
        %s291 = scalar_lea.vmem %s1, %s290
        %p292 = pneg %p69
        %p293 = pneg %p66
        %p294 = pneg %p90
        %p295 = pneg %p87
        %p296 = pneg %p111
        %p297 = pneg %p108
        %p298 = pneg %p132
        %p299 = pneg %p129
        %p300 = pneg %p153
        %p301 = pneg %p150
        %p302 = pneg %p174
        %p303 = pneg %p171
        %p304 = pneg %p195
        %p305 = pneg %p192
        %p306 = pneg %p221
        %p307 = pneg %p218
        %s308 = sand.u32 %s208, 1
        %s309 = scalar_lea.sflag [#allocation3], %s308
        %s310 = sand.u32 %s208, 1
        %s311 = smul.addr %s310, 8
        %s312 = scalar_lea.vmem [#allocation2], %s311
        %p313 = scmp.lt.s32.totalorder %s22, 1
        %s314 = scalar_select %p313, %s22, 1
        %s315 = smul.addr %s314, 8
        %s316 = scalar_lea.vmem %s0, %s315
        %s317 = smul.u32 2, %s22
        %p318 = scmp.lt.s32.totalorder %s317, 3
        %s319 = scalar_select %p318, %s317, 3
        %s320 = smul.addr %s319, 8
        %s321 = scalar_lea.vmem %s1, %s320
        %s322 = smul.u32 2, %s22
        %v324 = vld [vmem:[%s316] sm:$0xff]
        %v325 = vpack.c.bf16 %v324, %v324
        %v326 = vld [vmem:[%s4] sm:$0xff]
        %v327 = vld [vmem:[%s4 + $0x8] sm:$0xff]
        %v328 = vld [vmem:[%s5] sm:$0x3]
        %v330 = vlaneseq
        %v331 = vshrl.u32 %v330, 7
        %v332 = vsub.s32 0, %v331
        %v333 = vrot.slane %v328, %v332
        %v334 = vlaneseq
        %v335 = vshrl.u32 %v334, 7
        %v336 = vsub.s32 1, %v335
        %v337 = vrot.slane %v328, %v336
        %v342 = vunpack.c.l.b16 %v326
        %v343 = vunpack.c.h.b16 %v326
        %v344 = vunpack.c.l.b16 %v327
        %v345 = vunpack.c.h.b16 %v327
        %v346 = vpack.c.b16 %v344, %v342
        %v347 = vpack.c.b16 %v345, %v343
        %vm350 = vcmask 130048
        %v352 = vsel %vm350, %v325, 0
        %354 = vmatprep.subr.bf16.mxu0 0
        %355 = vmatpush1.bf16.msra.mxu0 0
        %356 = vmatprep.subr.bf16.mxu0 0
        %357 = vmatpush1.bf16.msra.mxu0 0
        %358 = vmatprep.subr.bf16.mxu0 0
        %359 = vmatpush1.bf16.msra.mxu0 0
        %360 = vmatprep.subr.bf16.mxu0 0
        %361 = vmatpush1.bf16.msra.mxu0 0
        %362 = vmatprep.subr.bf16.mxu0 0
        %363 = vmatpush1.bf16.msra.mxu0 0
        %364 = vmatprep.subr.bf16.mxu0 0
        %365 = vmatpush1.bf16.msra.mxu0 0
        %366 = vmatprep.subr.bf16.mxu0 0
        %367 = vmatpush1.bf16.msra.mxu0 0
        %368 = vmatprep.subr.bf16.mxu0 %v347
        %369 = vmatpush1.bf16.msra.mxu0 %v346
        %370 = vmatprep.subr.bf16.mxu0 0
        %371 = vmatpush2.bf16.msra.mxu0 0
        %372 = vmatprep.subr.bf16.mxu0 0
        %373 = vmatpush2.bf16.msra.mxu0 0
        %374 = vmatprep.subr.bf16.mxu0 0
        %375 = vmatpush2.bf16.msra.mxu0 0
        %376 = vmatprep.subr.bf16.mxu0 0
        %377 = vmatpush2.bf16.msra.mxu0 0
        %378 = vmatprep.subr.bf16.mxu0 0
        %379 = vmatpush2.bf16.msra.mxu0 0
        %380 = vmatprep.subr.bf16.mxu0 0
        %381 = vmatpush2.bf16.msra.mxu0 0
        %382 = vmatprep.subr.bf16.mxu0 0
        %383 = vmatpush2.bf16.msra.mxu0 0
        %384 = vmatprep.subr.bf16.mxu0 0
        %385 = vmatpush2.bf16.msra.mxu0 0
        %386 = vmatprep.mubr.bf16.mxu0 0
        %387 = vmatmul.mubr.bf16.gmra.mxu0 %v352
        %v388 = vpop.f32.mrf.mxu0
        %v389 = vadd.f32 %v333, %v388
        %v390 = vpop.f32.mrf.mxu0
        %v391 = vadd.f32 %v337, %v390
        %v392 = vpop.f32.mrf.mxu0
        %v393 = vpop.f32.mrf.mxu0
        %394 = vdwg.mxu0
        %v395 = vld [vmem:[%s321] sm:$0xff]
        %v396 = vld [vmem:[%s321 + $0x8] sm:$0xff]
        %v397 = vld [vmem:[%s2] sm:$0xff]
        %v398 = vld [vmem:[%s2 + $0x8] sm:$0xff]
        %v399 = vld [vmem:[%s3] sm:$0xff]
        %v400 = vld [vmem:[%s6] sm:$0xf]
        %v401 = vld [vmem:[%s6 + $0x4] sm:$0xf]
        %v402 = vld [vmem:[%s6 + $0x8] sm:$0xf]
        %v403 = vld [vmem:[%s6 + $0xc] sm:$0xf]
        %v404 = vld [vmem:[%s7] sm:$0x1]
        %406 = vrot.lane.b32.xlu0 %v389, 32
        %v407 = vpop.permute.xlu0 %406
        %v409 = vpack.c.bf16 %v407, %v389
        %411 = vrot.lane.b32.xlu0 %v391, 32
        %v412 = vpop.permute.xlu0 %411
        %v414 = vpack.c.bf16 %v412, %v389
        %416 = vrot.lane.b32.xlu0 %v414, 96
        %v417 = vpop.permute.xlu0 %416
        %v419 = vsel %vm350, %v409, 0
        %v422 = vsel %vm350, %v417, 0
        %424 = vmatprep.subr.bf16.mxu0 0
        %425 = vmatpush1.bf16.xpose.msra.mxu0 0
        %426 = vmatprep.subr.bf16.mxu0 0
        %427 = vmatpush1.bf16.xpose.msra.mxu0 0
        %428 = vmatprep.subr.bf16.mxu0 0
        %429 = vmatpush1.bf16.xpose.msra.mxu0 0
        %430 = vmatprep.subr.bf16.mxu0 0
        %431 = vmatpush1.bf16.xpose.msra.mxu0 0
        %432 = vmatprep.subr.bf16.mxu0 0
        %433 = vmatpush1.bf16.xpose.msra.mxu0 0
        %434 = vmatprep.subr.bf16.mxu0 0
        %435 = vmatpush1.bf16.xpose.msra.mxu0 0
        %436 = vmatprep.subr.bf16.mxu0 0
        %437 = vmatpush1.bf16.xpose.msra.mxu0 0
        %438 = vmatprep.subr.bf16.mxu0 0
        %439 = vmatpush1.bf16.xpose.msra.mxu0 %v422
        %440 = vmatprep.subr.bf16.mxu0 0
        %441 = vmatpush2.bf16.xpose.msra.mxu0 0
        %442 = vmatprep.subr.bf16.mxu0 0
        %443 = vmatpush2.bf16.xpose.msra.mxu0 0
        %444 = vmatprep.subr.bf16.mxu0 0
        %445 = vmatpush2.bf16.xpose.msra.mxu0 0
        %446 = vmatprep.subr.bf16.mxu0 0
        %447 = vmatpush2.bf16.xpose.msra.mxu0 0
        %448 = vmatprep.subr.bf16.mxu0 0
        %449 = vmatpush2.bf16.xpose.msra.mxu0 0
        %450 = vmatprep.subr.bf16.mxu0 0
        %451 = vmatpush2.bf16.xpose.msra.mxu0 0
        %452 = vmatprep.subr.bf16.mxu0 0
        %453 = vmatpush2.bf16.xpose.msra.mxu0 0
        %454 = vmatprep.subr.bf16.mxu0 0
        %455 = vmatpush2.bf16.xpose.msra.mxu0 0
        %456 = vmatprep.mubr.bf16.mxu0 0
        %457 = vmatmul.mubr.bf16.gmra.mxu0 %v419
        %v458 = vpop.f32.mrf.mxu0
        %v459 = vadd.f32 0.0, %v458
        %v460 = vpop.f32.mrf.mxu0
        %v461 = vpop.f32.mrf.mxu0
        %v462 = vadd.f32 0.0, %v461
        %v463 = vpop.f32.mrf.mxu0
        %464 = vdwg.mxu0
        %v465 = vmul.f32 %v459, %v395
        %v466 = vmul.f32 %v462, %v396
        %v467 = vadd.f32 %v465, %v397
        %v468 = vadd.f32 %v466, %v398
        %v469 = vsel %vm350, %v467, -inf
        %470 = vmax.xlane.f32.xlu0 %v469
        %v471 = vpop.xlane.xlu0 %470
        %v472 = vsel %vm350, %v468, -inf
        %473 = vmax.xlane.f32.xlu0 %v472
        %v474 = vpop.xlane.xlu0 %473
        %v475 = vsub.f32 %v467, %v471
        %v476 = vsub.f32 %v468, %v474
        %v477 = vmul.f32 %v475, 1.442695
        %v478 = vpow.pop %v477
        %v479 = vmul.f32 %v476, 1.442695
        %v480 = vpow.pop %v479
        %v481 = vsel %vm350, %v478, 0.0
        %482 = vadd.xlane.f32.xlu0 %v481
        %v483 = vpop.xlane.xlu0 %482
        %v484 = vsel %vm350, %v480, 0.0
        %485 = vadd.xlane.f32.xlu0 %v484
        %v486 = vpop.xlane.xlu0 %485
        %v487 = vpack.c.bf16 %v480, %v478
        %488 = vrot.lane.b32.xlu0 %v414, 64
        %v489 = vpop.permute.xlu0 %488
        %v492 = vsel %vm350, %v487, 0
        %494 = vmatprep.subr.bf16.mxu0 0
        %495 = vmatpush1.bf16.msra.mxu0 0
        %496 = vmatprep.subr.bf16.mxu0 0
        %497 = vmatpush1.bf16.msra.mxu0 0
        %498 = vmatprep.subr.bf16.mxu0 0
        %499 = vmatpush1.bf16.msra.mxu0 0
        %500 = vmatprep.subr.bf16.mxu0 0
        %501 = vmatpush1.bf16.msra.mxu0 0
        %502 = vmatprep.subr.bf16.mxu0 0
        %503 = vmatpush1.bf16.msra.mxu0 0
        %504 = vmatprep.subr.bf16.mxu0 0
        %505 = vmatpush1.bf16.msra.mxu0 0
        %506 = vmatprep.subr.bf16.mxu0 0
        %507 = vmatpush1.bf16.msra.mxu0 0
        %508 = vmatprep.subr.bf16.mxu0 0
        %509 = vmatpush1.bf16.msra.mxu0 %v489
        %510 = vmatprep.subr.bf16.mxu0 0
        %511 = vmatpush2.bf16.msra.mxu0 0
        %512 = vmatprep.subr.bf16.mxu0 0
        %513 = vmatpush2.bf16.msra.mxu0 0
        %514 = vmatprep.subr.bf16.mxu0 0
        %515 = vmatpush2.bf16.msra.mxu0 0
        %516 = vmatprep.subr.bf16.mxu0 0
        %517 = vmatpush2.bf16.msra.mxu0 0
        %518 = vmatprep.subr.bf16.mxu0 0
        %519 = vmatpush2.bf16.msra.mxu0 0
        %520 = vmatprep.subr.bf16.mxu0 0
        %521 = vmatpush2.bf16.msra.mxu0 0
        %522 = vmatprep.subr.bf16.mxu0 0
        %523 = vmatpush2.bf16.msra.mxu0 0
        %524 = vmatprep.subr.bf16.mxu0 0
        %525 = vmatpush2.bf16.msra.mxu0 0
        %526 = vmatprep.mubr.bf16.mxu0 0
        %527 = vmatmul.mubr.bf16.gmra.mxu0 %v492
        %v528 = vpop.f32.mrf.mxu0
        %v529 = vadd.f32 0.0, %v528
        %v530 = vpop.f32.mrf.mxu0
        %v531 = vpop.f32.mrf.mxu0
        %v532 = vadd.f32 0.0, %v531
        %v533 = vpop.f32.mrf.mxu0
        %534 = vdwg.mxu0
        %v535 = vrcp.pop %v483
        %v536 = vrcp.pop %v486
        %v537 = vmul.f32 %v529, %v535
        %v538 = vmul.f32 %v532, %v536
        %v539 = vpack.c.bf16 %v538, %v537
        %541 = vrot.lane.b32.xlu0 %v409, 112
        %v542 = vpop.permute.xlu0 %541
        %543 = vrot.lane.b32.xlu0 %v414, 80
        %v544 = vpop.permute.xlu0 %543
        %v546 = vsel %vm350, %v542, 0
        %v549 = vsel %vm350, %v544, 0
        %551 = vmatprep.subr.bf16.mxu0 0
        %552 = vmatpush1.bf16.xpose.msra.mxu0 0
        %553 = vmatprep.subr.bf16.mxu0 0
        %554 = vmatpush1.bf16.xpose.msra.mxu0 0
        %555 = vmatprep.subr.bf16.mxu0 0
        %556 = vmatpush1.bf16.xpose.msra.mxu0 0
        %557 = vmatprep.subr.bf16.mxu0 0
        %558 = vmatpush1.bf16.xpose.msra.mxu0 0
        %559 = vmatprep.subr.bf16.mxu0 0
        %560 = vmatpush1.bf16.xpose.msra.mxu0 0
        %561 = vmatprep.subr.bf16.mxu0 0
        %562 = vmatpush1.bf16.xpose.msra.mxu0 0
        %563 = vmatprep.subr.bf16.mxu0 0
        %564 = vmatpush1.bf16.xpose.msra.mxu0 0
        %565 = vmatprep.subr.bf16.mxu0 0
        %566 = vmatpush1.bf16.xpose.msra.mxu0 %v549
        %567 = vmatprep.subr.bf16.mxu0 0
        %568 = vmatpush2.bf16.xpose.msra.mxu0 0
        %569 = vmatprep.subr.bf16.mxu0 0
        %570 = vmatpush2.bf16.xpose.msra.mxu0 0
        %571 = vmatprep.subr.bf16.mxu0 0
        %572 = vmatpush2.bf16.xpose.msra.mxu0 0
        %573 = vmatprep.subr.bf16.mxu0 0
        %574 = vmatpush2.bf16.xpose.msra.mxu0 0
        %575 = vmatprep.subr.bf16.mxu0 0
        %576 = vmatpush2.bf16.xpose.msra.mxu0 0
        %577 = vmatprep.subr.bf16.mxu0 0
        %578 = vmatpush2.bf16.xpose.msra.mxu0 0
        %579 = vmatprep.subr.bf16.mxu0 0
        %580 = vmatpush2.bf16.xpose.msra.mxu0 0
        %581 = vmatprep.subr.bf16.mxu0 0
        %582 = vmatpush2.bf16.xpose.msra.mxu0 0
        %583 = vmatprep.mubr.bf16.mxu0 0
        %584 = vmatmul.mubr.bf16.gmra.mxu0 %v546
        %v585 = vpop.f32.mrf.mxu0
        %v586 = vadd.f32 0.0, %v585
        %v587 = vpop.f32.mrf.mxu0
        %v588 = vpop.f32.mrf.mxu0
        %v589 = vadd.f32 0.0, %v588
        %v590 = vpop.f32.mrf.mxu0
        %591 = vdwg.mxu0
        %v592 = vmul.f32 %v586, %v395
        %v593 = vmul.f32 %v589, %v396
        %v594 = vadd.f32 %v592, %v397
        %v595 = vadd.f32 %v593, %v398
        %v596 = vsel %vm350, %v594, -inf
        %597 = vmax.xlane.f32.xlu0 %v596
        %v598 = vpop.xlane.xlu0 %597
        %v599 = vsel %vm350, %v595, -inf
        %600 = vmax.xlane.f32.xlu0 %v599
        %v601 = vpop.xlane.xlu0 %600
        %v602 = vsub.f32 %v594, %v598
        %v603 = vsub.f32 %v595, %v601
        %v604 = vmul.f32 %v602, 1.442695
        %v605 = vpow.pop %v604
        %v606 = vmul.f32 %v603, 1.442695
        %v607 = vpow.pop %v606
        %v608 = vsel %vm350, %v605, 0.0
        %609 = vadd.xlane.f32.xlu0 %v608
        %v610 = vpop.xlane.xlu0 %609
        %v611 = vsel %vm350, %v607, 0.0
        %612 = vadd.xlane.f32.xlu0 %v611
        %v613 = vpop.xlane.xlu0 %612
        %v614 = vpack.c.bf16 %v607, %v605
        %615 = vrot.lane.b32.xlu0 %v414, 48
        %v616 = vpop.permute.xlu0 %615
        %v619 = vsel %vm350, %v614, 0
        %621 = vmatprep.subr.bf16.mxu0 0
        %622 = vmatpush1.bf16.msra.mxu0 0
        %623 = vmatprep.subr.bf16.mxu0 0
        %624 = vmatpush1.bf16.msra.mxu0 0
        %625 = vmatprep.subr.bf16.mxu0 0
        %626 = vmatpush1.bf16.msra.mxu0 0
        %627 = vmatprep.subr.bf16.mxu0 0
        %628 = vmatpush1.bf16.msra.mxu0 0
        %629 = vmatprep.subr.bf16.mxu0 0
        %630 = vmatpush1.bf16.msra.mxu0 0
        %631 = vmatprep.subr.bf16.mxu0 0
        %632 = vmatpush1.bf16.msra.mxu0 0
        %633 = vmatprep.subr.bf16.mxu0 0
        %634 = vmatpush1.bf16.msra.mxu0 0
        %635 = vmatprep.subr.bf16.mxu0 0
        %636 = vmatpush1.bf16.msra.mxu0 %v616
        %637 = vmatprep.subr.bf16.mxu0 0
        %638 = vmatpush2.bf16.msra.mxu0 0
        %639 = vmatprep.subr.bf16.mxu0 0
        %640 = vmatpush2.bf16.msra.mxu0 0
        %641 = vmatprep.subr.bf16.mxu0 0
        %642 = vmatpush2.bf16.msra.mxu0 0
        %643 = vmatprep.subr.bf16.mxu0 0
        %644 = vmatpush2.bf16.msra.mxu0 0
        %645 = vmatprep.subr.bf16.mxu0 0
        %646 = vmatpush2.bf16.msra.mxu0 0
        %647 = vmatprep.subr.bf16.mxu0 0
        %648 = vmatpush2.bf16.msra.mxu0 0
        %649 = vmatprep.subr.bf16.mxu0 0
        %650 = vmatpush2.bf16.msra.mxu0 0
        %651 = vmatprep.subr.bf16.mxu0 0
        %652 = vmatpush2.bf16.msra.mxu0 0
        %653 = vmatprep.mubr.bf16.mxu0 0
        %654 = vmatmul.mubr.bf16.gmra.mxu0 %v619
        %v655 = vpop.f32.mrf.mxu0
        %v656 = vadd.f32 0.0, %v655
        %v657 = vpop.f32.mrf.mxu0
        %v658 = vpop.f32.mrf.mxu0
        %v659 = vadd.f32 0.0, %v658
        %v660 = vpop.f32.mrf.mxu0
        %661 = vdwg.mxu0
        %v662 = vrcp.pop %v610
        %v663 = vrcp.pop %v613
        %v664 = vmul.f32 %v656, %v662
        %v665 = vmul.f32 %v659, %v663
        %v666 = vpack.c.bf16 %v665, %v664
        %v669 = vunpack.c.l.b16 %v402
        %v670 = vunpack.c.l.b16 %v403
        %v671 = vpack.c.b16 %v670, %v669
        %v674 = vsel %vm350, %v666, 0
        %676 = vmatprep.subr.bf16.mxu0 0
        %677 = vmatpush1.bf16.msra.mxu0 0
        %678 = vmatprep.subr.bf16.mxu0 0
        %679 = vmatpush1.bf16.msra.mxu0 0
        %680 = vmatprep.subr.bf16.mxu0 0
        %681 = vmatpush1.bf16.msra.mxu0 0
        %682 = vmatprep.subr.bf16.mxu0 0
        %683 = vmatpush1.bf16.msra.mxu0 0
        %684 = vmatprep.subr.bf16.mxu0 0
        %685 = vmatpush1.bf16.msra.mxu0 0
        %686 = vmatprep.subr.bf16.mxu0 0
        %687 = vmatpush1.bf16.msra.mxu0 0
        %688 = vmatprep.subr.bf16.mxu0 0
        %689 = vmatpush1.bf16.msra.mxu0 0
        %690 = vmatprep.subr.bf16.mxu0 0
        %691 = vmatpush1.bf16.msra.mxu0 %v671
        %692 = vmatprep.subr.bf16.mxu0 0
        %693 = vmatpush2.bf16.msra.mxu0 0
        %694 = vmatprep.subr.bf16.mxu0 0
        %695 = vmatpush2.bf16.msra.mxu0 0
        %696 = vmatprep.subr.bf16.mxu0 0
        %697 = vmatpush2.bf16.msra.mxu0 0
        %698 = vmatprep.subr.bf16.mxu0 0
        %699 = vmatpush2.bf16.msra.mxu0 0
        %700 = vmatprep.subr.bf16.mxu0 0
        %701 = vmatpush2.bf16.msra.mxu0 0
        %702 = vmatprep.subr.bf16.mxu0 0
        %703 = vmatpush2.bf16.msra.mxu0 0
        %704 = vmatprep.subr.bf16.mxu0 0
        %705 = vmatpush2.bf16.msra.mxu0 0
        %706 = vmatprep.subr.bf16.mxu0 0
        %707 = vmatpush2.bf16.msra.mxu0 0
        %708 = vmatprep.mubr.bf16.mxu0 0
        %709 = vmatmul.mubr.bf16.gmra.mxu0 %v674
        %v710 = vpop.f32.mrf.mxu0
        %v711 = vadd.f32 0.0, %v710
        %v712 = vpop.f32.mrf.mxu0
        %v713 = vpop.f32.mrf.mxu0
        %v714 = vadd.f32 0.0, %v713
        %v715 = vpop.f32.mrf.mxu0
        %716 = vdwg.mxu0
        %v719 = vunpack.c.l.b16 %v400
        %v720 = vunpack.c.l.b16 %v401
        %v721 = vpack.c.b16 %v720, %v719
        %v724 = vsel %vm350, %v539, 0
        %726 = vmatprep.subr.bf16.mxu0 0
        %727 = vmatpush1.bf16.msra.mxu0 0
        %728 = vmatprep.subr.bf16.mxu0 0
        %729 = vmatpush1.bf16.msra.mxu0 0
        %730 = vmatprep.subr.bf16.mxu0 0
        %731 = vmatpush1.bf16.msra.mxu0 0
        %732 = vmatprep.subr.bf16.mxu0 0
        %733 = vmatpush1.bf16.msra.mxu0 0
        %734 = vmatprep.subr.bf16.mxu0 0
        %735 = vmatpush1.bf16.msra.mxu0 0
        %736 = vmatprep.subr.bf16.mxu0 0
        %737 = vmatpush1.bf16.msra.mxu0 0
        %738 = vmatprep.subr.bf16.mxu0 0
        %739 = vmatpush1.bf16.msra.mxu0 0
        %740 = vmatprep.subr.bf16.mxu0 0
        %741 = vmatpush1.bf16.msra.mxu0 %v721
        %742 = vmatprep.subr.bf16.mxu0 0
        %743 = vmatpush2.bf16.msra.mxu0 0
        %744 = vmatprep.subr.bf16.mxu0 0
        %745 = vmatpush2.bf16.msra.mxu0 0
        %746 = vmatprep.subr.bf16.mxu0 0
        %747 = vmatpush2.bf16.msra.mxu0 0
        %748 = vmatprep.subr.bf16.mxu0 0
        %749 = vmatpush2.bf16.msra.mxu0 0
        %750 = vmatprep.subr.bf16.mxu0 0
        %751 = vmatpush2.bf16.msra.mxu0 0
        %752 = vmatprep.subr.bf16.mxu0 0
        %753 = vmatpush2.bf16.msra.mxu0 0
        %754 = vmatprep.subr.bf16.mxu0 0
        %755 = vmatpush2.bf16.msra.mxu0 0
        %756 = vmatprep.subr.bf16.mxu0 0
        %757 = vmatpush2.bf16.msra.mxu0 0
        %758 = vmatprep.mubr.bf16.mxu0 0
        %759 = vmatmul.mubr.bf16.gmra.mxu0 %v724
        %v760 = vpop.f32.mrf.mxu0
        %v761 = vadd.f32 %v711, %v760
        %v762 = vpop.f32.mrf.mxu0
        %v763 = vpop.f32.mrf.mxu0
        %v764 = vadd.f32 %v714, %v763
        %v765 = vpop.f32.mrf.mxu0
        %766 = vdwg.mxu0
        %vm767 = vcmask 64512
        %v769 = vsel %vm767, %v399, 0
        %771 = vmatprep.subr.mxu0 0.0
        %772 = vmatpush1.msra.mxu0 0.0
        %773 = vmatprep.subr.mxu0 0.0
        %774 = vmatpush1.msra.mxu0 0.0
        %775 = vmatprep.subr.mxu0 0.0
        %776 = vmatpush1.msra.mxu0 0.0
        %777 = vmatprep.subr.mxu0 0.0
        %778 = vmatpush1.msra.mxu0 0.0
        %779 = vmatprep.subr.mxu0 0.0
        %780 = vmatpush1.msra.mxu0 0.0
        %781 = vmatprep.subr.mxu0 0.0
        %782 = vmatpush1.msra.mxu0 0.0
        %783 = vmatprep.subr.mxu0 0.0
        %784 = vmatpush1.msra.mxu0 0.0
        %785 = vmatprep.subr.mxu0 0.0
        %786 = vmatpush1.msra.mxu0 0.0
        %787 = vmatprep.subr.mxu0 0.0
        %788 = vmatpush1.msra.mxu0 0.0
        %789 = vmatprep.subr.mxu0 0.0
        %790 = vmatpush1.msra.mxu0 0.0
        %791 = vmatprep.subr.mxu0 0.0
        %792 = vmatpush1.msra.mxu0 0.0
        %793 = vmatprep.subr.mxu0 0.0
        %794 = vmatpush1.msra.mxu0 0.0
        %795 = vmatprep.subr.mxu0 0.0
        %796 = vmatpush1.msra.mxu0 0.0
        %797 = vmatprep.subr.mxu0 0.0
        %798 = vmatpush1.msra.mxu0 0.0
        %799 = vmatprep.subr.mxu0 0.0
        %800 = vmatpush1.msra.mxu0 0.0
        %801 = vmatprep.subr.mxu0 0.0
        %802 = vmatpush1.msra.mxu0 %v764
        %803 = vmatprep.subr.mxu0 0.0
        %804 = vmatpush2.msra.mxu0 0.0
        %805 = vmatprep.subr.mxu0 0.0
        %806 = vmatpush2.msra.mxu0 0.0
        %807 = vmatprep.subr.mxu0 0.0
        %808 = vmatpush2.msra.mxu0 0.0
        %809 = vmatprep.subr.mxu0 0.0
        %810 = vmatpush2.msra.mxu0 0.0
        %811 = vmatprep.subr.mxu0 0.0
        %812 = vmatpush2.msra.mxu0 0.0
        %813 = vmatprep.subr.mxu0 0.0
        %814 = vmatpush2.msra.mxu0 0.0
        %815 = vmatprep.subr.mxu0 0.0
        %816 = vmatpush2.msra.mxu0 0.0
        %817 = vmatprep.subr.mxu0 0.0
        %818 = vmatpush2.msra.mxu0 0.0
        %819 = vmatprep.subr.mxu0 0.0
        %820 = vmatpush2.msra.mxu0 0.0
        %821 = vmatprep.subr.mxu0 0.0
        %822 = vmatpush2.msra.mxu0 0.0
        %823 = vmatprep.subr.mxu0 0.0
        %824 = vmatpush2.msra.mxu0 0.0
        %825 = vmatprep.subr.mxu0 0.0
        %826 = vmatpush2.msra.mxu0 0.0
        %827 = vmatprep.subr.mxu0 0.0
        %828 = vmatpush2.msra.mxu0 0.0
        %829 = vmatprep.subr.mxu0 0.0
        %830 = vmatpush2.msra.mxu0 0.0
        %831 = vmatprep.subr.mxu0 0.0
        %832 = vmatpush2.msra.mxu0 0.0
        %833 = vmatprep.subr.mxu0 0.0
        %834 = vmatpush2.msra.mxu0 0.0
        %835 = vmatprep.mubr.f32.mxu0 0.0
        %836 = vmatmul.mubr.f32.gmra.mxu0 %v769
        %v837 = vpop.f32.mrf.mxu0
        %v838 = vadd.f32 0.0, %v837
        %v839 = vpop.f32.mrf.mxu0
        %840 = vdwg.mxu0
        %v841 = vadd.f32 %v761, %v838
        %v842 = vmul.f32 %v841, 0.5
        %v844 = vlaneseq
        %v845 = vshrl.u32 %v844, 7
        %v846 = vsub.s32 0, %v845
        %v847 = vrot.slane %v404, %v846
        %v849 = vadd.f32 %v842, %v847
        %850 = vst.msk [vmem:[%s312] sm:$0xff] %vm350, %v849
        %s851 = sand.u32 %s208, 1
        %s852 = scalar_lea.sflag [#allocation3], %s851
        %s853 = sand.u32 %s208, 1
        %s854 = smul.addr %s853, 8
        %s855 = scalar_lea.vmem [#allocation2], %s854
        // Predicated region
        $region53: #{two_directional_attention.1} parent=51 // pred_check
          %p856 = pneg %p218
        $region54: #{two_directional_attention.1} parent=51 // pred_check_branch
          %858 = sbr.rel (%p856) target = $region56
        $region55: #{two_directional_attention.1} parent=51 // pred_region
          %s860 = ssub.s32 128, 128
          %861 = vsyncadd %s852, %s860
          %s862 = smul.addr %s22, 128
          %s863 = scalar_lea.hbm %s8, %s862
          %s865 = sshll.u32 %s855, 4
          %s866 = int_to_ptr.vmem [resolvable:$true] %s865
          %868 = dma.vmem_to_hbm [thread:$0]  %s866, 128, %s863, %s852
        $region56: #{two_directional_attention.1} parent=51 // pred_fallthru
          _
      $region52: #{two_directional_attention.1} parent=5 // pred_fallthru
        _
      %p869 = scmp.le.s32.totalorder 2, %s17
      // Predicated region
      $region57: #{two_directional_attention.1} parent=5 // pred_check
        %p870 = pneg %p869
      $region58: #{two_directional_attention.1} parent=5 // pred_check_branch
        %872 = sbr.rel (%p870) target = $region60
      $region59: #{two_directional_attention.1} parent=5 // pred_region
        %s873 = ssub.s32 %s17, 2
        // Predicated region
        $region61: #{two_directional_attention.1} parent=59 // pred_check
          %p874 = pneg %p224
        $region62: #{two_directional_attention.1} parent=59 // pred_check_branch
          %876 = sbr.rel (%p874) target = $region64
        $region63: #{two_directional_attention.1} parent=59 // pred_region
          %s877 = sand.u32 %s209, 1
          %s878 = scalar_lea.sflag [#allocation3], %s877
          %s879 = sand.u32 %s209, 1
          %s880 = smul.addr %s879, 8
          %s881 = scalar_lea.vmem [#allocation2], %s880
          %882 = dma.done %s878, 128
        $region64: #{two_directional_attention.1} parent=59 // pred_fallthru
          _
      $region60: #{two_directional_attention.1} parent=5 // pred_fallthru
        _
    $region6: #{two_directional_attention.1} parent=1 // loop_footer
      %s21 = sadd.s32 1, %s17
    $region7: #{two_directional_attention.1} parent=1 // loop_footer_branch
      %16 = sbr.rel target = $region3
    $region8: #{two_directional_attention.1} parent=1 // loop_exit
      _
    %883 = vsyncpa [#allocation3], 1
    %s884 = scalar_lea.sflag [#allocation3], 1
    %885 = vsyncpa %s884, 1

</llo_original>
